<compile_context>
chip_gen: v6e
topology: v6e:2x2x1
jax: 0.10.0
libtpu: 0.0.40
codegen_flags: <defaults>
</compile_context>

<pallas_src>
import functools

import jax
import jax.numpy as jnp
from jax import lax
from jax.experimental import pallas as pl
from jax.experimental.pallas import tpu as pltpu


def _round_up(n, m):
    return (n + m - 1) // m * m


# a[m, k] . b[n, k] -> [m, n]  (same transposed-RHS dims the pallas flash
# attention kernels use; lowers to an MXU matmul, no materialized transpose).
_TRANS_B_DIMS = (((1,), (1,)), ((), ()))


def _full3net_kernel(x_ref,
                     w1_ref, b1_ref,
                     w2_ref, b2_ref,
                     w3_ref, b3_ref,
                     w4_ref, b4_ref,
                     out_ref,
                     *, act_dtype, mm_dtype):
    adt, mdt = act_dtype, mm_dtype

    # ---- layer 1: in(2) -> hid, tanh.
    # x arrives as a (TB, 2) block in its native layout.  Contract its minor
    # dim (the 2 input features) against w1's minor dim: z1 = w1 @ x^T on the
    # MXU, which both performs the batch-on-lanes relayout and the K=2 matmul.
    z1 = lax.dot_general(w1_ref[...], x_ref[...], _TRANS_B_DIMS,
                         preferred_element_type=jnp.float32) + b1_ref[...]
    h1 = jnp.tanh(z1.astype(adt))                              # [hid, TB]

    # ---- layers 2/3: [hid,hid] @ [hid,TB] on the MXU, f32 accumulation.
    # Weights pre-cast to mm dtype in the wrapper (no per-step weight casts).
    z2 = jnp.dot(w2_ref[...], h1.astype(mdt),
                 preferred_element_type=jnp.float32) + b2_ref[...]
    h2 = jnp.tanh(z2.astype(adt))
    z3 = jnp.dot(w3_ref[...], h2.astype(mdt),
                 preferred_element_type=jnp.float32) + b3_ref[...]
    h3 = jnp.tanh(z3.astype(adt))

    # ---- layer 4: hid -> 1.  [1,hid]@[hid,TB] gives a lane-dense (1, TB) row.
    o = jnp.dot(w4_ref[...], h3.astype(mdt),
                preferred_element_type=jnp.float32) + b4_ref[...]

    # sigmoid: exp (EUP) + approx reciprocal (EUP) -- keeps the VPU free.
    out_ref[...] = pl.reciprocal(1.0 + jnp.exp(-o), approx=True).astype(out_ref.dtype)


def _choose_tile(B, hid, block_b, mm_bytes):
    lane = 128
    # >= 4 grid tiles when the batch allows it (v7x: both TCs get work; all
    # gens: the x/out BlockSpec double-buffering actually overlaps DMA).
    tb = _round_up(pl.cdiv(max(B, 1), 4), lane)
    tb = max(lane, min(tb, _round_up(block_b, lane)))

    # hid-aware cap: keep the per-step working set under ~12 MiB, below the
    # smallest scoped-VMEM default (16 MiB on v5e, 32 MiB on v6e/v7x).
    budget = 12 * 1024 * 1024
    hid8 = _round_up(max(hid, 1), 8)
    weights = 2 * (2 * hid * hid * mm_bytes + hid8 * 512 + 4 * hid8 * 128)
    avail = max(budget - weights, 2 * 1024 * 1024)

    def per_tb_bytes(t):
        x_blk = 2 * t * 512          # (t, 2) f32 block, lane-padded, double-buffered
        o_blk = 2 * t * 32           # (1, t) f32 block, double-buffered
        live = 6 * hid8 * t * 4      # ~6 live [hid, t] f32-wide intermediates
        return x_blk + o_blk + live

    while tb > lane and per_tb_bytes(tb) > avail:
        tb -= lane
    return tb


def default_dtypes():
    """Returns (act_dtype, mm_dtype).

    bf16 tanh/exp path only on v6e/v7x (they have bf16 VPU/EUP); bf16 MXU
    operands everywhere (halves matmul pass count, incl. v5e).
    """
    try:
        kind = jax.devices()[0].device_kind.lower()
    except Exception:
        return jnp.float32, jnp.float32
    if "v6" in kind or "v7" in kind:
        return jnp.bfloat16, jnp.bfloat16
    return jnp.float32, jnp.bfloat16


def full3net_forward(x, params, *, block_b=4096, act_dtype=None, mm_dtype=None,
                     out_layout="torch", vmem_limit_bytes=None):
    """x: [B, 2] float32; params in PyTorch layout (w: [out, in], b: [out]).

    Returns sigmoid(MLP(x)); shape [B, 1] ("torch") or [B] ("flat", no relayout).
    """
    x = jnp.asarray(x, jnp.float32)
    B, in_dim = x.shape
    assert in_dim == 2
    hid = params["w1"].shape[0]

    d_act, d_mm = default_dtypes()
    act_dtype = d_act if act_dtype is None else act_dtype
    mm_dtype = d_mm if mm_dtype is None else mm_dtype

    tb = _choose_tile(B, hid, block_b, jnp.dtype(mm_dtype).itemsize)
    num_tiles = pl.cdiv(B, tb)

    # One-time wrapper-side casts (review item: no per-step weight casts).
    w1 = params["w1"].astype(jnp.float32)                 # layer-1 stays f32 (tiny)
    b1 = params["b1"].reshape(hid, 1).astype(jnp.float32)
    w2 = params["w2"].astype(mm_dtype)
    b2 = params["b2"].reshape(hid, 1).astype(jnp.float32)
    w3 = params["w3"].astype(mm_dtype)
    b3 = params["b3"].reshape(hid, 1).astype(jnp.float32)
    w4 = params["w4"].reshape(1, hid).astype(mm_dtype)
    b4 = params["b4"].reshape(1, 1).astype(jnp.float32)

    const = lambda i: (0, 0)   # weights/biases stay VMEM-resident across tiles
    in_specs = [
        pl.BlockSpec((tb, 2), lambda i: (i, 0)),          # x in native (B, 2) layout
        pl.BlockSpec(w1.shape, const), pl.BlockSpec(b1.shape, const),
        pl.BlockSpec(w2.shape, const), pl.BlockSpec(b2.shape, const),
        pl.BlockSpec(w3.shape, const), pl.BlockSpec(b3.shape, const),
        pl.BlockSpec(w4.shape, const), pl.BlockSpec(b4.shape, const),
    ]

    kernel = functools.partial(_full3net_kernel,
                               act_dtype=act_dtype, mm_dtype=mm_dtype)

    out_row = pl.pallas_call(
        kernel,
        out_shape=jax.ShapeDtypeStruct((1, B), jnp.float32),
        grid=(num_tiles,),
        in_specs=in_specs,
        out_specs=pl.BlockSpec((1, tb), lambda i: (0, i)),   # lane-dense store
        compiler_params=pltpu.CompilerParams(
            dimension_semantics=("parallel",),   # v7x: shard tiles over both TCs
            vmem_limit_bytes=vmem_limit_bytes,
        ),
    )(x, w1, b1, w2, b2, w3, b3, w4, b4)

    if out_layout == "flat":
        return out_row[0]            # (B,), lane-major -- no relayout pass
    return out_row.reshape(B, 1)     # PyTorch (B, 1) convention


def init_params(hid, key):
    """nn.Linear-style U(-1/sqrt(fan_in), +) init, PyTorch [out, in] layout."""
    keys = jax.random.split(key, 8)

    def linear(kw, kb, fan_in, fan_out):
        bound = 1.0 / jnp.sqrt(jnp.float32(fan_in))
        w = jax.random.uniform(kw, (fan_out, fan_in), jnp.float32, -bound, bound)
        b = jax.random.uniform(kb, (fan_out,), jnp.float32, -bound, bound)
        return w, b

    w1, b1 = linear(keys[0], keys[1], 2, hid)
    w2, b2 = linear(keys[2], keys[3], hid, hid)
    w3, b3 = linear(keys[4], keys[5], hid, hid)
    w4, b4 = linear(keys[6], keys[7], hid, 1)
    return {"w1": w1, "b1": b1, "w2": w2, "b2": b2,
            "w3": w3, "b3": b3, "w4": w4, "b4": b4}


def _reference_forward(x, p):
    """Pure-JAX reference of the PyTorch forward (x @ W.T + b convention)."""
    with jax.default_matmul_precision("highest"):
        h1 = jnp.tanh(x @ p["w1"].T + p["b1"])
        h2 = jnp.tanh(h1 @ p["w2"].T + p["b2"])
        h3 = jnp.tanh(h2 @ p["w3"].T + p["b3"])
        return jax.nn.sigmoid(h3 @ p["w4"].T + p["b4"])


if __name__ == "__main__":
    key = jax.random.PRNGKey(0)
    k_x, k_x2, k_p = jax.random.split(key, 3)

    HID = 32
    params = init_params(HID, k_p)

    act_dt, mm_dt = default_dtypes()
    any_bf16 = (jnp.dtype(act_dt) == jnp.dtype(jnp.bfloat16)
                or jnp.dtype(mm_dt) == jnp.dtype(jnp.bfloat16))
    tol = 5e-2 if any_bf16 else 2e-3

    # 1) small batch (single tile, ragged in both block dims), default dtypes.
    B = 8
    x = jax.random.normal(k_x, (B, 2), jnp.float32)
    out = jax.block_until_ready(full3net_forward(x, params))
    ref = _reference_forward(x, params)
    assert out.shape == (B, 1)
    assert jnp.allclose(out, ref, atol=tol, rtol=tol), float(jnp.max(jnp.abs(out - ref)))

    # 2) ragged multi-tile batch (heuristic -> tb=256, 3 grid tiles): exercises
    #    pipelining and masked partial blocks without any wrapper padding.
    B2 = 700
    x2 = jax.random.normal(k_x2, (B2, 2), jnp.float32)
    out2 = jax.block_until_ready(full3net_forward(x2, params))
    ref2 = _reference_forward(x2, params)
    assert out2.shape == (B2, 1)
    assert jnp.allclose(out2, ref2, atol=tol, rtol=tol), float(jnp.max(jnp.abs(out2 - ref2)))

    # 3) full-f32 escape hatch + relayout-free lane-major output, 6-tile grid.
    out3 = jax.block_until_ready(
        full3net_forward(x2, params, block_b=128,
                         act_dtype=jnp.float32, mm_dtype=jnp.float32,
                         out_layout="flat"))
    assert out3.shape == (B2,)
    assert jnp.allclose(out3, ref2[:, 0], atol=2e-3, rtol=2e-3), \
        float(jnp.max(jnp.abs(out3 - ref2[:, 0])))

    print("KERNEL_OK")
</pallas_src>

<mosaic_0001>
module attributes {stable_mosaic.version = 11 : i64} {
  func.func @_full3net_kernel(%arg0: i32, %arg1: memref<128x2xf32, #tpu.memory_space<vmem>>, %arg2: memref<32x2xf32, #tpu.memory_space<vmem>>, %arg3: memref<32x1xf32, #tpu.memory_space<vmem>>, %arg4: memref<32x32xbf16, #tpu.memory_space<vmem>>, %arg5: memref<32x1xf32, #tpu.memory_space<vmem>>, %arg6: memref<32x32xbf16, #tpu.memory_space<vmem>>, %arg7: memref<32x1xf32, #tpu.memory_space<vmem>>, %arg8: memref<1x32xbf16, #tpu.memory_space<vmem>>, %arg9: memref<1x1xf32, #tpu.memory_space<vmem>>, %arg10: memref<1x128xf32, #tpu.memory_space<vmem>>) attributes {dimension_semantics = [#tpu.dimension_semantics<parallel>], iteration_bounds = array<i64: 1>, scalar_prefetch = 0 : i64, scratch_operands = 0 : i64, tpu.core_type = #tpu.core_type<tc>, window_params = [{transform_indices = @transform_0, window_bounds = array<i64: 128, 2>}, {pipeline_mode = #tpu.pipeline_mode<synchronous>, transform_indices = @transform_1, window_bounds = array<i64: 32, 2>}, {pipeline_mode = #tpu.pipeline_mode<synchronous>, transform_indices = @transform_2, window_bounds = array<i64: 32, 1>}, {pipeline_mode = #tpu.pipeline_mode<synchronous>, transform_indices = @transform_3, window_bounds = array<i64: 32, 32>}, {pipeline_mode = #tpu.pipeline_mode<synchronous>, transform_indices = @transform_4, window_bounds = array<i64: 32, 1>}, {pipeline_mode = #tpu.pipeline_mode<synchronous>, transform_indices = @transform_5, window_bounds = array<i64: 32, 32>}, {pipeline_mode = #tpu.pipeline_mode<synchronous>, transform_indices = @transform_6, window_bounds = array<i64: 32, 1>}, {pipeline_mode = #tpu.pipeline_mode<synchronous>, transform_indices = @transform_7, window_bounds = array<i64: 1, 32>}, {pipeline_mode = #tpu.pipeline_mode<synchronous>, transform_indices = @transform_8, window_bounds = array<i64: 1, 1>}, {transform_indices = @transform_9, window_bounds = array<i64: 1, 128>}]} {
    %c0 = arith.constant 0 : index
    %c0_0 = arith.constant 0 : index
    %0 = vector.load %arg2[%c0, %c0_0] : memref<32x2xf32, #tpu.memory_space<vmem>>, vector<32x2xf32>
    %c0_1 = arith.constant 0 : index
    %c0_2 = arith.constant 0 : index
    %1 = vector.load %arg1[%c0_1, %c0_2] : memref<128x2xf32, #tpu.memory_space<vmem>>, vector<128x2xf32>
    %cst = arith.constant dense<0.000000e+00> : vector<32x128xf32>
    %2 = tpu.matmul %0, %1, %cst {dimension_numbers = #tpu.dot_dimension_numbers<[1], [1], [0], [0], [0, 0, 1, 0], [], []>} : vector<32x2xf32>, vector<128x2xf32>, vector<32x128xf32> -> vector<32x128xf32>
    %c0_3 = arith.constant 0 : index
    %c0_4 = arith.constant 0 : index
    %3 = vector.load %arg3[%c0_3, %c0_4] : memref<32x1xf32, #tpu.memory_space<vmem>>, vector<32x1xf32>
    %4 = vector.broadcast %3 : vector<32x1xf32> to vector<32x128xf32>
    %5 = arith.addf %2, %4 : vector<32x128xf32>
    %6 = math.tanh %5 : vector<32x128xf32>
    %c0_5 = arith.constant 0 : index
    %c0_6 = arith.constant 0 : index
    %7 = vector.load %arg4[%c0_5, %c0_6] : memref<32x32xbf16, #tpu.memory_space<vmem>>, vector<32x32xbf16>
    %8 = arith.truncf %6 : vector<32x128xf32> to vector<32x128xbf16>
    %cst_7 = arith.constant dense<0.000000e+00> : vector<32x128xf32>
    %9 = tpu.matmul %7, %8, %cst_7 {dimension_numbers = #tpu.dot_dimension_numbers<[1], [0], [0], [1], [0, 0, 1, 1], [], []>} : vector<32x32xbf16>, vector<32x128xbf16>, vector<32x128xf32> -> vector<32x128xf32>
    %c0_8 = arith.constant 0 : index
    %c0_9 = arith.constant 0 : index
    %10 = vector.load %arg5[%c0_8, %c0_9] : memref<32x1xf32, #tpu.memory_space<vmem>>, vector<32x1xf32>
    %11 = vector.broadcast %10 : vector<32x1xf32> to vector<32x128xf32>
    %12 = arith.addf %9, %11 : vector<32x128xf32>
    %13 = math.tanh %12 : vector<32x128xf32>
    %c0_10 = arith.constant 0 : index
    %c0_11 = arith.constant 0 : index
    %14 = vector.load %arg6[%c0_10, %c0_11] : memref<32x32xbf16, #tpu.memory_space<vmem>>, vector<32x32xbf16>
    %15 = arith.truncf %13 : vector<32x128xf32> to vector<32x128xbf16>
    %cst_12 = arith.constant dense<0.000000e+00> : vector<32x128xf32>
    %16 = tpu.matmul %14, %15, %cst_12 {dimension_numbers = #tpu.dot_dimension_numbers<[1], [0], [0], [1], [0, 0, 1, 1], [], []>} : vector<32x32xbf16>, vector<32x128xbf16>, vector<32x128xf32> -> vector<32x128xf32>
    %c0_13 = arith.constant 0 : index
    %c0_14 = arith.constant 0 : index
    %17 = vector.load %arg7[%c0_13, %c0_14] : memref<32x1xf32, #tpu.memory_space<vmem>>, vector<32x1xf32>
    %18 = vector.broadcast %17 : vector<32x1xf32> to vector<32x128xf32>
    %19 = arith.addf %16, %18 : vector<32x128xf32>
    %20 = math.tanh %19 : vector<32x128xf32>
    %c0_15 = arith.constant 0 : index
    %c0_16 = arith.constant 0 : index
    %21 = vector.load %arg8[%c0_15, %c0_16] : memref<1x32xbf16, #tpu.memory_space<vmem>>, vector<1x32xbf16>
    %22 = arith.truncf %20 : vector<32x128xf32> to vector<32x128xbf16>
    %cst_17 = arith.constant dense<0.000000e+00> : vector<1x128xf32>
    %23 = tpu.matmul %21, %22, %cst_17 {dimension_numbers = #tpu.dot_dimension_numbers<[1], [0], [0], [1], [0, 0, 1, 1], [], []>} : vector<1x32xbf16>, vector<32x128xbf16>, vector<1x128xf32> -> vector<1x128xf32>
    %c0_18 = arith.constant 0 : index
    %c0_19 = arith.constant 0 : index
    %24 = vector.load %arg9[%c0_18, %c0_19] : memref<1x1xf32, #tpu.memory_space<vmem>>, vector<1x1xf32>
    %25 = vector.broadcast %24 : vector<1x1xf32> to vector<1x128xf32>
    %26 = arith.addf %23, %25 : vector<1x128xf32>
    %cst_20 = arith.constant 0.000000e+00 : f32
    %27 = vector.broadcast %cst_20 : f32 to vector<1x128xf32>
    %28 = arith.subf %27, %26 : vector<1x128xf32>
    %29 = math.exp %28 : vector<1x128xf32>
    %cst_21 = arith.constant 1.000000e+00 : f32
    %30 = vector.broadcast %cst_21 : f32 to vector<1x128xf32>
    %31 = arith.addf %30, %29 : vector<1x128xf32>
    %32 = tpu.reciprocal %31 {approx = true} : vector<1x128xf32> -> vector<1x128xf32>
    %c0_22 = arith.constant 0 : index
    %c0_23 = arith.constant 0 : index
    %33 = vector.load %arg10[%c0_22, %c0_23] : memref<1x128xf32, #tpu.memory_space<vmem>>, vector<1x128xf32>
    tpu.vector_store %arg10[%c0_22, %c0_23], %32 {strides = array<i32>} : memref<1x128xf32, #tpu.memory_space<vmem>>, vector<1x128xf32>,
    return
  }
  func.func @transform_0(%arg0: i32) -> (i32, i32) {
    %c0_i32 = arith.constant 0 : i32
    %c0_i32_0 = arith.constant 0 : i32
    return %arg0, %c0_i32 : i32, i32
  }
  func.func @transform_1(%arg0: i32) -> (i32, i32) {
    %c0_i32 = arith.constant 0 : i32
    %c0_i32_0 = arith.constant 0 : i32
    %c0_i32_1 = arith.constant 0 : i32
    return %c0_i32, %c0_i32_0 : i32, i32
  }
  func.func @transform_2(%arg0: i32) -> (i32, i32) {
    %c0_i32 = arith.constant 0 : i32
    %c0_i32_0 = arith.constant 0 : i32
    %c0_i32_1 = arith.constant 0 : i32
    return %c0_i32, %c0_i32_0 : i32, i32
  }
  func.func @transform_3(%arg0: i32) -> (i32, i32) {
    %c0_i32 = arith.constant 0 : i32
    %c0_i32_0 = arith.constant 0 : i32
    %c0_i32_1 = arith.constant 0 : i32
    return %c0_i32, %c0_i32_0 : i32, i32
  }
  func.func @transform_4(%arg0: i32) -> (i32, i32) {
    %c0_i32 = arith.constant 0 : i32
    %c0_i32_0 = arith.constant 0 : i32
    %c0_i32_1 = arith.constant 0 : i32
    return %c0_i32, %c0_i32_0 : i32, i32
  }
  func.func @transform_5(%arg0: i32) -> (i32, i32) {
    %c0_i32 = arith.constant 0 : i32
    %c0_i32_0 = arith.constant 0 : i32
    %c0_i32_1 = arith.constant 0 : i32
    return %c0_i32, %c0_i32_0 : i32, i32
  }
  func.func @transform_6(%arg0: i32) -> (i32, i32) {
    %c0_i32 = arith.constant 0 : i32
    %c0_i32_0 = arith.constant 0 : i32
    %c0_i32_1 = arith.constant 0 : i32
    return %c0_i32, %c0_i32_0 : i32, i32
  }
  func.func @transform_7(%arg0: i32) -> (i32, i32) {
    %c0_i32 = arith.constant 0 : i32
    %c0_i32_0 = arith.constant 0 : i32
    %c0_i32_1 = arith.constant 0 : i32
    return %c0_i32, %c0_i32_0 : i32, i32
  }
  func.func @transform_8(%arg0: i32) -> (i32, i32) {
    %c0_i32 = arith.constant 0 : i32
    %c0_i32_0 = arith.constant 0 : i32
    %c0_i32_1 = arith.constant 0 : i32
    return %c0_i32, %c0_i32_0 : i32, i32
  }
  func.func @transform_9(%arg0: i32) -> (i32, i32) {
    %c0_i32 = arith.constant 0 : i32
    %c0_i32_0 = arith.constant 0 : i32
    return %c0_i32, %arg0 : i32, i32
  }
}

</mosaic_0001>

<llo_original>
// kernel: tpu_custom_call.1
$region0: #{tpu_custom_call.1}
  #allocation0 [shape = 'u32[]', space=smem, size = 0x4, offset = 0x4, fixed_abs, tag = 'smem constant byte address 0x4 - core index']
  #allocation1 [shape = 'u32[144,128]{1,0:T(1,128)}', space=vmem, size = 0x12000, scoped, tag = 'internal scratch']
  #allocation2 [shape = 'f32[1,1]{1,0:T(1,128)S(1)}', space=vmem, size = 0x200, scoped, tag = 'scoped memory for tpu_custom_call.1']
  %s0 = inlined_call_operand.vmem [shape: f32[8,2], index: 0, kind: input, shape index: {}]
  %s1 = inlined_call_operand.vmem [shape: f32[32,2], index: 1, kind: input, shape index: {}]
  %s2 = inlined_call_operand.vmem [shape: f32[32,1], index: 2, kind: input, shape index: {}]
  %s3 = inlined_call_operand.vmem [shape: bf16[32,32], index: 3, kind: input, shape index: {}]
  %s4 = inlined_call_operand.vmem [shape: f32[32,1], index: 4, kind: input, shape index: {}]
  %s5 = inlined_call_operand.vmem [shape: bf16[32,32], index: 5, kind: input, shape index: {}]
  %s6 = inlined_call_operand.vmem [shape: f32[32,1], index: 6, kind: input, shape index: {}]
  %s7 = inlined_call_operand.vmem [shape: bf16[1,32], index: 7, kind: input, shape index: {}]
  %s8 = inlined_call_operand.<no memory space> [shape: f32[1,1], index: 8, kind: input, shape index: {}]
  %s9 = inlined_call_operand.hbm [shape: f32[1,8], index: 9, kind: output, shape index: {}]
  %s10 = sld [smem:[#allocation0]]
  $region46: #{tpu_custom_call.1} parent=0
    _
  %s12 = ssub.s32 1, %s10
  %s13 = scalar_select 0, %s12, %s10
  %v14 = vstv %s8
  %15 = vst [vmem:[#allocation2] sm:$0x1] %v14
  $region1: #{tpu_custom_call.1} parent=0
    #allocation3 [shape = 'u8[512]{0}', space=vmem, size = 0x400, scoped, tag = 'output window, operand 0, single buffered']
    #allocation4 [shape = 's32[1]{0}', space=sflag, size = 0x4, scoped, tag = 'scoped memory for tpu_custom_call.1']
    %16 = vsyncpa [#allocation4], 0
    // Predicated region
    $region2: #{tpu_custom_call.1} parent=1 // pred_check
      _
    $region3: #{tpu_custom_call.1} parent=1 // pred_check_branch
      %18 = sbr.rel (0) target = $region5
    $region4: #{tpu_custom_call.1} parent=1 // pred_region
      _
    $region5: #{tpu_custom_call.1} parent=1 // pred_fallthru
      _
    // Predicated region
    $region6: #{tpu_custom_call.1} parent=1 // pred_check
      _
    $region7: #{tpu_custom_call.1} parent=1 // pred_check_branch
      %20 = sbr.rel (0) target = $region9
    $region8: #{tpu_custom_call.1} parent=1 // pred_region
      _
    $region9: #{tpu_custom_call.1} parent=1 // pred_fallthru
      _
    // Predicated region
    $region10: #{tpu_custom_call.1} parent=1 // pred_check
      _
    $region11: #{tpu_custom_call.1} parent=1 // pred_check_branch
      %22 = sbr.rel (0) target = $region13
    $region12: #{tpu_custom_call.1} parent=1 // pred_region
      _
    $region13: #{tpu_custom_call.1} parent=1 // pred_fallthru
      _
    // Predicated region
    $region14: #{tpu_custom_call.1} parent=1 // pred_check
      _
    $region15: #{tpu_custom_call.1} parent=1 // pred_check_branch
      %24 = sbr.rel (0) target = $region17
    $region16: #{tpu_custom_call.1} parent=1 // pred_region
      _
    $region17: #{tpu_custom_call.1} parent=1 // pred_fallthru
      _
    // Predicated region
    $region18: #{tpu_custom_call.1} parent=1 // pred_check
      _
    $region19: #{tpu_custom_call.1} parent=1 // pred_check_branch
      %26 = sbr.rel (0) target = $region21
    $region20: #{tpu_custom_call.1} parent=1 // pred_region
      _
    $region21: #{tpu_custom_call.1} parent=1 // pred_fallthru
      _
    // Predicated region
    $region22: #{tpu_custom_call.1} parent=1 // pred_check
      _
    $region23: #{tpu_custom_call.1} parent=1 // pred_check_branch
      %28 = sbr.rel (0) target = $region25
    $region24: #{tpu_custom_call.1} parent=1 // pred_region
      _
    $region25: #{tpu_custom_call.1} parent=1 // pred_fallthru
      _
    // Predicated region
    $region26: #{tpu_custom_call.1} parent=1 // pred_check
      _
    $region27: #{tpu_custom_call.1} parent=1 // pred_check_branch
      %30 = sbr.rel (0) target = $region29
    $region28: #{tpu_custom_call.1} parent=1 // pred_region
      _
    $region29: #{tpu_custom_call.1} parent=1 // pred_fallthru
      _
    // Predicated region
    $region30: #{tpu_custom_call.1} parent=1 // pred_check
      _
    $region31: #{tpu_custom_call.1} parent=1 // pred_check_branch
      %32 = sbr.rel (0) target = $region33
    $region32: #{tpu_custom_call.1} parent=1 // pred_region
      _
    $region33: #{tpu_custom_call.1} parent=1 // pred_fallthru
      _
    // Predicated region
    $region34: #{tpu_custom_call.1} parent=1 // pred_check
      _
    $region35: #{tpu_custom_call.1} parent=1 // pred_check_branch
      %34 = sbr.rel (0) target = $region37
    $region36: #{tpu_custom_call.1} parent=1 // pred_region
      _
    $region37: #{tpu_custom_call.1} parent=1 // pred_fallthru
      _
    %v36 = vld [vmem:[%s1] sm:$0xff]
    %v37 = vld [vmem:[%s1 + $0x8] sm:$0xff]
    %v38 = vld [vmem:[%s1 + $0x10] sm:$0xff]
    %v39 = vld [vmem:[%s1 + $0x18] sm:$0xff]
    %v40 = vld [vmem:[%s0] sm:$0xff]
    %v41 = vld [vmem:[%s0 + $0x8] sm:$0xff]
    %v42 = vld [vmem:[%s0 + $0x10] sm:$0xff]
    %v43 = vld [vmem:[%s0 + $0x18] sm:$0xff]
    %v44 = vld [vmem:[%s0 + $0x20] sm:$0xff]
    %v45 = vld [vmem:[%s0 + $0x28] sm:$0xff]
    %v46 = vld [vmem:[%s0 + $0x30] sm:$0xff]
    %v47 = vld [vmem:[%s0 + $0x38] sm:$0xff]
    %v48 = vld [vmem:[%s0 + $0x40] sm:$0xff]
    %v49 = vld [vmem:[%s0 + $0x48] sm:$0xff]
    %v50 = vld [vmem:[%s0 + $0x50] sm:$0xff]
    %v51 = vld [vmem:[%s0 + $0x58] sm:$0xff]
    %v52 = vld [vmem:[%s0 + $0x60] sm:$0xff]
    %v53 = vld [vmem:[%s0 + $0x68] sm:$0xff]
    %v54 = vld [vmem:[%s0 + $0x70] sm:$0xff]
    %v55 = vld [vmem:[%s0 + $0x78] sm:$0xff]
    %v56 = vld [vmem:[%s2] sm:$0xff]
    %v57 = vld [vmem:[%s2 + $0x8] sm:$0xff]
    %v58 = vld [vmem:[%s2 + $0x10] sm:$0xff]
    %v59 = vld [vmem:[%s2 + $0x18] sm:$0xff]
    %61 = vset.pattern.permute.xlu0 0
    %62 = vperm.xlu0 %61, %v56
    %v63 = vpop.permute.xlu0 %62
    %66 = vset.pattern.permute.xlu0 0
    %67 = vperm.xlu0 %66, %v57
    %v68 = vpop.permute.xlu0 %67
    %71 = vset.pattern.permute.xlu0 0
    %72 = vperm.xlu0 %71, %v58
    %v73 = vpop.permute.xlu0 %72
    %76 = vset.pattern.permute.xlu0 0
    %77 = vperm.xlu0 %76, %v59
    %v78 = vpop.permute.xlu0 %77
    %vm80 = vcmask 15360
    %v82 = vsel %vm80, %v36, 0
    %v85 = vsel %vm80, %v37, 0
    %v88 = vsel %vm80, %v38, 0
    %v91 = vsel %vm80, %v39, 0
    %v94 = vsel %vm80, %v40, 0
    %v97 = vsel %vm80, %v41, 0
    %v100 = vsel %vm80, %v42, 0
    %v103 = vsel %vm80, %v43, 0
    %v106 = vsel %vm80, %v44, 0
    %v109 = vsel %vm80, %v45, 0
    %v112 = vsel %vm80, %v46, 0
    %v115 = vsel %vm80, %v47, 0
    %v118 = vsel %vm80, %v48, 0
    %v121 = vsel %vm80, %v49, 0
    %v124 = vsel %vm80, %v50, 0
    %v127 = vsel %vm80, %v51, 0
    %v130 = vsel %vm80, %v52, 0
    %v133 = vsel %vm80, %v53, 0
    %v136 = vsel %vm80, %v54, 0
    %v139 = vsel %vm80, %v55, 0
    %141 = vmatprep.subr.mxu0 0.0
    %142 = vmatpush1.xpose.msra.mxu0 %v139
    %143 = vmatprep.subr.mxu0 0.0
    %144 = vmatpush1.xpose.msra.mxu0 %v136
    %145 = vmatprep.subr.mxu0 0.0
    %146 = vmatpush1.xpose.msra.mxu0 %v133
    %147 = vmatprep.subr.mxu0 0.0
    %148 = vmatpush1.xpose.msra.mxu0 %v130
    %149 = vmatprep.subr.mxu0 0.0
    %150 = vmatpush1.xpose.msra.mxu0 %v127
    %151 = vmatprep.subr.mxu0 0.0
    %152 = vmatpush1.xpose.msra.mxu0 %v124
    %153 = vmatprep.subr.mxu0 0.0
    %154 = vmatpush1.xpose.msra.mxu0 %v121
    %155 = vmatprep.subr.mxu0 0.0
    %156 = vmatpush1.xpose.msra.mxu0 %v118
    %157 = vmatprep.subr.mxu0 0.0
    %158 = vmatpush1.xpose.msra.mxu0 %v115
    %159 = vmatprep.subr.mxu0 0.0
    %160 = vmatpush1.xpose.msra.mxu0 %v112
    %161 = vmatprep.subr.mxu0 0.0
    %162 = vmatpush1.xpose.msra.mxu0 %v109
    %163 = vmatprep.subr.mxu0 0.0
    %164 = vmatpush1.xpose.msra.mxu0 %v106
    %165 = vmatprep.subr.mxu0 0.0
    %166 = vmatpush1.xpose.msra.mxu0 %v103
    %167 = vmatprep.subr.mxu0 0.0
    %168 = vmatpush1.xpose.msra.mxu0 %v100
    %169 = vmatprep.subr.mxu0 0.0
    %170 = vmatpush1.xpose.msra.mxu0 %v97
    %171 = vmatprep.subr.mxu0 0.0
    %172 = vmatpush1.xpose.msra.mxu0 %v94
    %173 = vmatprep.subr.mxu0 0.0
    %174 = vmatpush2.xpose.msra.mxu0 0.0
    %175 = vmatprep.subr.mxu0 0.0
    %176 = vmatpush2.xpose.msra.mxu0 0.0
    %177 = vmatprep.subr.mxu0 0.0
    %178 = vmatpush2.xpose.msra.mxu0 0.0
    %179 = vmatprep.subr.mxu0 0.0
    %180 = vmatpush2.xpose.msra.mxu0 0.0
    %181 = vmatprep.subr.mxu0 0.0
    %182 = vmatpush2.xpose.msra.mxu0 0.0
    %183 = vmatprep.subr.mxu0 0.0
    %184 = vmatpush2.xpose.msra.mxu0 0.0
    %185 = vmatprep.subr.mxu0 0.0
    %186 = vmatpush2.xpose.msra.mxu0 0.0
    %187 = vmatprep.subr.mxu0 0.0
    %188 = vmatpush2.xpose.msra.mxu0 0.0
    %189 = vmatprep.subr.mxu0 0.0
    %190 = vmatpush2.xpose.msra.mxu0 0.0
    %191 = vmatprep.subr.mxu0 0.0
    %192 = vmatpush2.xpose.msra.mxu0 0.0
    %193 = vmatprep.subr.mxu0 0.0
    %194 = vmatpush2.xpose.msra.mxu0 0.0
    %195 = vmatprep.subr.mxu0 0.0
    %196 = vmatpush2.xpose.msra.mxu0 0.0
    %197 = vmatprep.subr.mxu0 0.0
    %198 = vmatpush2.xpose.msra.mxu0 0.0
    %199 = vmatprep.subr.mxu0 0.0
    %200 = vmatpush2.xpose.msra.mxu0 0.0
    %201 = vmatprep.subr.mxu0 0.0
    %202 = vmatpush2.xpose.msra.mxu0 0.0
    %203 = vmatprep.subr.mxu0 0.0
    %204 = vmatpush2.xpose.msra.mxu0 0.0
    %205 = vmatprep.mubr.f32.mxu0 0.0
    %206 = vmatmul.mubr.f32.gmra.mxu0 %v82
    %v207 = vpop.f32.mrf.mxu0
    %v208 = vadd.f32 %v63, %v207
    %v209 = vpop.f32.mrf.mxu0
    %210 = vmatprep.mubr.f32.mxu0 0.0
    %211 = vmatmul.mubr.f32.gmra.mxu0 %v85
    %v212 = vpop.f32.mrf.mxu0
    %v213 = vadd.f32 %v68, %v212
    %v214 = vpop.f32.mrf.mxu0
    %215 = vmatprep.mubr.f32.mxu0 0.0
    %216 = vmatmul.mubr.f32.gmra.mxu0 %v88
    %v217 = vpop.f32.mrf.mxu0
    %v218 = vadd.f32 %v73, %v217
    %v219 = vpop.f32.mrf.mxu0
    %220 = vmatprep.mubr.f32.mxu0 0.0
    %221 = vmatmul.mubr.f32.gmra.mxu0 %v91
    %v222 = vpop.f32.mrf.mxu0
    %v223 = vadd.f32 %v78, %v222
    %v224 = vpop.f32.mrf.mxu0
    %225 = vdwg.mxu0
    %v226 = vtanh.pop %v208
    %v227 = vtanh.pop %v213
    %v228 = vtanh.pop %v218
    %v229 = vtanh.pop %v223
    %v230 = vld [vmem:[%s3] sm:$0xf]
    %v231 = vld [vmem:[%s3 + $0x4] sm:$0xf]
    %v232 = vld [vmem:[%s3 + $0x8] sm:$0xf]
    %v233 = vld [vmem:[%s3 + $0xc] sm:$0xf]
    %v234 = vpack.c.bf16 %v227, %v226
    %v235 = vpack.c.bf16 %v229, %v228
    %v236 = vld [vmem:[%s4] sm:$0xff]
    %v237 = vld [vmem:[%s4 + $0x8] sm:$0xff]
    %v238 = vld [vmem:[%s4 + $0x10] sm:$0xff]
    %v239 = vld [vmem:[%s4 + $0x18] sm:$0xff]
    %241 = vset.pattern.permute.xlu0 0
    %242 = vperm.xlu0 %241, %v236
    %v243 = vpop.permute.xlu0 %242
    %246 = vset.pattern.permute.xlu0 0
    %247 = vperm.xlu0 %246, %v237
    %v248 = vpop.permute.xlu0 %247
    %251 = vset.pattern.permute.xlu0 0
    %252 = vperm.xlu0 %251, %v238
    %v253 = vpop.permute.xlu0 %252
    %256 = vset.pattern.permute.xlu0 0
    %257 = vperm.xlu0 %256, %v239
    %v258 = vpop.permute.xlu0 %257
    %v264 = vunpack.c.l.b16 %v230
    %v265 = vunpack.c.l.b16 %v231
    %v266 = vunpack.c.l.b16 %v232
    %v267 = vunpack.c.l.b16 %v233
    %v268 = vpack.c.b16 %v265, %v264
    %v269 = vpack.c.b16 %v267, %v266
    %vm270 = vcmask 261120
    %v272 = vsel %vm270, %v268, 0
    %v275 = vsel %vm270, %v269, 0
    %277 = vmatprep.subr.bf16.mxu0 0
    %278 = vmatpush1.bf16.msra.mxu0 0
    %279 = vmatprep.subr.bf16.mxu0 0
    %280 = vmatpush1.bf16.msra.mxu0 0
    %281 = vmatprep.subr.bf16.mxu0 0
    %282 = vmatpush1.bf16.msra.mxu0 0
    %283 = vmatprep.subr.bf16.mxu0 0
    %284 = vmatpush1.bf16.msra.mxu0 0
    %285 = vmatprep.subr.bf16.mxu0 0
    %286 = vmatpush1.bf16.msra.mxu0 0
    %287 = vmatprep.subr.bf16.mxu0 0
    %288 = vmatpush1.bf16.msra.mxu0 0
    %289 = vmatprep.subr.bf16.mxu0 0
    %290 = vmatpush1.bf16.msra.mxu0 %v235
    %291 = vmatprep.subr.bf16.mxu0 0
    %292 = vmatpush1.bf16.msra.mxu0 %v234
    %293 = vmatprep.subr.bf16.mxu0 0
    %294 = vmatpush2.bf16.msra.mxu0 0
    %295 = vmatprep.subr.bf16.mxu0 0
    %296 = vmatpush2.bf16.msra.mxu0 0
    %297 = vmatprep.subr.bf16.mxu0 0
    %298 = vmatpush2.bf16.msra.mxu0 0
    %299 = vmatprep.subr.bf16.mxu0 0
    %300 = vmatpush2.bf16.msra.mxu0 0
    %301 = vmatprep.subr.bf16.mxu0 0
    %302 = vmatpush2.bf16.msra.mxu0 0
    %303 = vmatprep.subr.bf16.mxu0 0
    %304 = vmatpush2.bf16.msra.mxu0 0
    %305 = vmatprep.subr.bf16.mxu0 0
    %306 = vmatpush2.bf16.msra.mxu0 0
    %307 = vmatprep.subr.bf16.mxu0 0
    %308 = vmatpush2.bf16.msra.mxu0 0
    %309 = vmatprep.mubr.bf16.mxu0 0
    %310 = vmatmul.mubr.bf16.gmra.mxu0 %v272
    %v311 = vpop.f32.mrf.mxu0
    %v312 = vadd.f32 %v243, %v311
    %v313 = vpop.f32.mrf.mxu0
    %v314 = vpop.f32.mrf.mxu0
    %v315 = vadd.f32 %v248, %v314
    %v316 = vpop.f32.mrf.mxu0
    %317 = vmatprep.mubr.bf16.mxu0 0
    %318 = vmatmul.mubr.bf16.gmra.mxu0 %v275
    %v319 = vpop.f32.mrf.mxu0
    %v320 = vadd.f32 %v253, %v319
    %v321 = vpop.f32.mrf.mxu0
    %v322 = vpop.f32.mrf.mxu0
    %v323 = vadd.f32 %v258, %v322
    %v324 = vpop.f32.mrf.mxu0
    %325 = vdwg.mxu0
    %v326 = vtanh.pop %v312
    %v327 = vtanh.pop %v315
    %v328 = vtanh.pop %v320
    %v329 = vtanh.pop %v323
    %v330 = vld [vmem:[%s5] sm:$0xf]
    %v331 = vld [vmem:[%s5 + $0x4] sm:$0xf]
    %v332 = vld [vmem:[%s5 + $0x8] sm:$0xf]
    %v333 = vld [vmem:[%s5 + $0xc] sm:$0xf]
    %v334 = vpack.c.bf16 %v327, %v326
    %v335 = vpack.c.bf16 %v329, %v328
    %v336 = vld [vmem:[%s6] sm:$0xff]
    %v337 = vld [vmem:[%s6 + $0x8] sm:$0xff]
    %v338 = vld [vmem:[%s6 + $0x10] sm:$0xff]
    %v339 = vld [vmem:[%s6 + $0x18] sm:$0xff]
    %341 = vset.pattern.permute.xlu0 0
    %342 = vperm.xlu0 %341, %v336
    %v343 = vpop.permute.xlu0 %342
    %346 = vset.pattern.permute.xlu0 0
    %347 = vperm.xlu0 %346, %v337
    %v348 = vpop.permute.xlu0 %347
    %351 = vset.pattern.permute.xlu0 0
    %352 = vperm.xlu0 %351, %v338
    %v353 = vpop.permute.xlu0 %352
    %356 = vset.pattern.permute.xlu0 0
    %357 = vperm.xlu0 %356, %v339
    %v358 = vpop.permute.xlu0 %357
    %v364 = vunpack.c.l.b16 %v330
    %v365 = vunpack.c.l.b16 %v331
    %v366 = vunpack.c.l.b16 %v332
    %v367 = vunpack.c.l.b16 %v333
    %v368 = vpack.c.b16 %v365, %v364
    %v369 = vpack.c.b16 %v367, %v366
    %v371 = vsel %vm270, %v368, 0
    %v374 = vsel %vm270, %v369, 0
    %376 = vmatprep.subr.bf16.mxu0 0
    %377 = vmatpush1.bf16.msra.mxu0 0
    %378 = vmatprep.subr.bf16.mxu0 0
    %379 = vmatpush1.bf16.msra.mxu0 0
    %380 = vmatprep.subr.bf16.mxu0 0
    %381 = vmatpush1.bf16.msra.mxu0 0
    %382 = vmatprep.subr.bf16.mxu0 0
    %383 = vmatpush1.bf16.msra.mxu0 0
    %384 = vmatprep.subr.bf16.mxu0 0
    %385 = vmatpush1.bf16.msra.mxu0 0
    %386 = vmatprep.subr.bf16.mxu0 0
    %387 = vmatpush1.bf16.msra.mxu0 0
    %388 = vmatprep.subr.bf16.mxu0 0
    %389 = vmatpush1.bf16.msra.mxu0 %v335
    %390 = vmatprep.subr.bf16.mxu0 0
    %391 = vmatpush1.bf16.msra.mxu0 %v334
    %392 = vmatprep.subr.bf16.mxu0 0
    %393 = vmatpush2.bf16.msra.mxu0 0
    %394 = vmatprep.subr.bf16.mxu0 0
    %395 = vmatpush2.bf16.msra.mxu0 0
    %396 = vmatprep.subr.bf16.mxu0 0
    %397 = vmatpush2.bf16.msra.mxu0 0
    %398 = vmatprep.subr.bf16.mxu0 0
    %399 = vmatpush2.bf16.msra.mxu0 0
    %400 = vmatprep.subr.bf16.mxu0 0
    %401 = vmatpush2.bf16.msra.mxu0 0
    %402 = vmatprep.subr.bf16.mxu0 0
    %403 = vmatpush2.bf16.msra.mxu0 0
    %404 = vmatprep.subr.bf16.mxu0 0
    %405 = vmatpush2.bf16.msra.mxu0 0
    %406 = vmatprep.subr.bf16.mxu0 0
    %407 = vmatpush2.bf16.msra.mxu0 0
    %408 = vmatprep.mubr.bf16.mxu0 0
    %409 = vmatmul.mubr.bf16.gmra.mxu0 %v371
    %v410 = vpop.f32.mrf.mxu0
    %v411 = vadd.f32 %v343, %v410
    %v412 = vpop.f32.mrf.mxu0
    %v413 = vpop.f32.mrf.mxu0
    %v414 = vadd.f32 %v348, %v413
    %v415 = vpop.f32.mrf.mxu0
    %416 = vmatprep.mubr.bf16.mxu0 0
    %417 = vmatmul.mubr.bf16.gmra.mxu0 %v374
    %v418 = vpop.f32.mrf.mxu0
    %v419 = vadd.f32 %v353, %v418
    %v420 = vpop.f32.mrf.mxu0
    %v421 = vpop.f32.mrf.mxu0
    %v422 = vadd.f32 %v358, %v421
    %v423 = vpop.f32.mrf.mxu0
    %424 = vdwg.mxu0
    %v425 = vtanh.pop %v411
    %v426 = vtanh.pop %v414
    %v427 = vtanh.pop %v419
    %v428 = vtanh.pop %v422
    %v429 = vld [vmem:[%s7] sm:$0x1]
    %v430 = vpack.c.bf16 %v426, %v425
    %v431 = vpack.c.bf16 %v428, %v427
    %v432 = vld [vmem:[#allocation2] sm:$0x1]
    %434 = vset.pattern.permute.xlu0 0
    %435 = vperm.xlu0 %434, %v432
    %v436 = vpop.permute.xlu0 %435
    %v438 = vlaneseq
    %v439 = vshrl.u32 %v438, 7
    %v440 = vsub.s32 0, %v439
    %v441 = vrot.slane %v436, %v440
    %v443 = vsel %vm270, %v429, 0
    %445 = vmatprep.subr.bf16.mxu0 0
    %446 = vmatpush1.bf16.msra.mxu0 0
    %447 = vmatprep.subr.bf16.mxu0 0
    %448 = vmatpush1.bf16.msra.mxu0 0
    %449 = vmatprep.subr.bf16.mxu0 0
    %450 = vmatpush1.bf16.msra.mxu0 0
    %451 = vmatprep.subr.bf16.mxu0 0
    %452 = vmatpush1.bf16.msra.mxu0 0
    %453 = vmatprep.subr.bf16.mxu0 0
    %454 = vmatpush1.bf16.msra.mxu0 0
    %455 = vmatprep.subr.bf16.mxu0 0
    %456 = vmatpush1.bf16.msra.mxu0 0
    %457 = vmatprep.subr.bf16.mxu0 0
    %458 = vmatpush1.bf16.msra.mxu0 %v431
    %459 = vmatprep.subr.bf16.mxu0 0
    %460 = vmatpush1.bf16.msra.mxu0 %v430
    %461 = vmatprep.subr.bf16.mxu0 0
    %462 = vmatpush2.bf16.msra.mxu0 0
    %463 = vmatprep.subr.bf16.mxu0 0
    %464 = vmatpush2.bf16.msra.mxu0 0
    %465 = vmatprep.subr.bf16.mxu0 0
    %466 = vmatpush2.bf16.msra.mxu0 0
    %467 = vmatprep.subr.bf16.mxu0 0
    %468 = vmatpush2.bf16.msra.mxu0 0
    %469 = vmatprep.subr.bf16.mxu0 0
    %470 = vmatpush2.bf16.msra.mxu0 0
    %471 = vmatprep.subr.bf16.mxu0 0
    %472 = vmatpush2.bf16.msra.mxu0 0
    %473 = vmatprep.subr.bf16.mxu0 0
    %474 = vmatpush2.bf16.msra.mxu0 0
    %475 = vmatprep.subr.bf16.mxu0 0
    %476 = vmatpush2.bf16.msra.mxu0 0
    %477 = vmatprep.mubr.bf16.mxu0 0
    %478 = vmatmul.mubr.bf16.gmra.mxu0 %v443
    %v479 = vpop.f32.mrf.mxu0
    %v480 = vadd.f32 %v441, %v479
    %v481 = vpop.f32.mrf.mxu0
    %v482 = vpop.f32.mrf.mxu0
    %v483 = vpop.f32.mrf.mxu0
    %484 = vdwg.mxu0
    %v485 = vsub.f32 0.0, %v480
    %v486 = vmul.f32 %v485, 1.442695
    %v487 = vpow.pop %v486
    %v488 = vadd.f32 %v487, 1.0
    %v489 = vrcp.pop %v488
    %490 = vst [vmem:[#allocation3] sm:$0x1] %v489
    // Predicated region
    $region38: #{tpu_custom_call.1} parent=1 // pred_check
      _
    $region39: #{tpu_custom_call.1} parent=1 // pred_check_branch
      %492 = sbr.rel (0) target = $region41
    $region40: #{tpu_custom_call.1} parent=1 // pred_region
      %s494 = ssub.s32 16, 16
      %495 = vsyncadd [#allocation4], %s494
      %s497 = sshll.u32 [#allocation3], 4
      %s498 = int_to_ptr.vmem [resolvable:$true] %s497
      %500 = dma.vmem_to_hbm [thread:$0]  %s498, 16, %s9, [#allocation4]
    $region41: #{tpu_custom_call.1} parent=1 // pred_fallthru
      _
    // Predicated region
    $region42: #{tpu_custom_call.1} parent=1 // pred_check
      _
    $region43: #{tpu_custom_call.1} parent=1 // pred_check_branch
      %502 = sbr.rel (0) target = $region45
    $region44: #{tpu_custom_call.1} parent=1 // pred_region
      %503 = dma.done [#allocation4], 16
    $region45: #{tpu_custom_call.1} parent=1 // pred_fallthru
      _
    %504 = vsyncpa [#allocation4], 1

</llo_original>
